<compile_context>
chip_gen: v7x
topology: tpu7x:2x2x1
jax: 0.10.0
libtpu: 0.0.40
codegen_flags: <defaults>
</compile_context>

<pallas_src>
import dataclasses
from typing import Optional

import jax
import jax.numpy as jnp
from jax.experimental import pallas as pl
from jax.experimental.pallas import tpu as pltpu

_VMEM_LIMIT_BYTES = 48 * 1024 * 1024   # explicit headroom under v7x's 64 MiB physical VMEM


# --------------------------------------------------------------------------
# small helpers
# --------------------------------------------------------------------------
def _round_up(x: int, m: int) -> int:
    return ((x + m - 1) // m) * m


def _pick_row_tile(rows: int, cap: int = 256) -> int:
    """Largest multiple of 8 <= cap dividing rows (rows is a multiple of 8)."""
    best, t = 8, 8
    while t <= min(rows, cap):
        if rows % t == 0:
            best = t
        t += 8
    return best


def _pick_lane_tile(n: int, cap: int = 512) -> int:
    """Largest multiple of 128 <= cap dividing n; if n isn't 128-aligned use n
    itself (block dim == full array dim is always legal)."""
    if n % 128 != 0:
        return n
    best, t = 128, 128
    while t <= min(n, cap):
        if n % t == 0:
            best = t
        t += 128
    return best


def _spec(block_shape, index_map, invariant: bool, single_buffer: bool) -> pl.BlockSpec:
    """BlockSpec; single-buffer it when its block index never changes over the grid."""
    if invariant and single_buffer:
        return pl.BlockSpec(block_shape, index_map, pipeline_mode=pl.Buffered(1))
    return pl.BlockSpec(block_shape, index_map)


def _run_route(fn, *args, **kwargs):
    """Prefer single-buffered grid-invariant operands (pl.Buffered(1)); fall back
    to default double-buffering if this jax/libtpu doesn't support it."""
    try:
        return fn(*args, single_buffer=True, **kwargs)
    except Exception:            # pragma: no cover - older jax without pipeline_mode
        return fn(*args, single_buffer=False, **kwargs)


# --------------------------------------------------------------------------
# 'vector' + 'crossattn' routes: one fused block-diagonal matmul per tile.
#   out[m, n] = (x[m, :] @ W_fused[:, n] + bias[n]) * scale(m, embedder(n))
# --------------------------------------------------------------------------
def _dense_route_kernel(scales_ref, colmask_ref, bias_ref, x_ref, w_ref, o_ref):
    n_emb = colmask_ref.shape[0]
    # single fused MXU matmul: bf16 operands, f32 accumulation
    acc = jnp.dot(x_ref[...], w_ref[...], preferred_element_type=jnp.float32)
    acc = acc + bias_ref[...]                                     # (1, tile_n) f32
    # per-sample / per-embedder scale expanded on the VPU (no MXU push for K=E)
    scale = scales_ref[:, 0:1] * colmask_ref[0:1, :]
    for e in range(1, n_emb):
        scale = scale + scales_ref[:, e:e + 1] * colmask_ref[e:e + 1, :]
    o_ref[...] = (acc * scale).astype(o_ref.dtype)


def fused_dense_route(x, w, bias, colmask, scales, *, out_dtype,
                      single_buffer=True, row_cap=256, lane_cap=512):
    """x: (rows, Dtot) bf16; w: (Dtot, Ntot) bf16; bias: (1, Ntot) f32;
    colmask: (E, Ntot) f32; scales: (rows, E) f32.  Returns (rows, Ntot)."""
    rows, dtot = x.shape
    ntot = w.shape[1]
    n_emb = colmask.shape[0]

    # keep the MXU M dimension sublane-aligned; tiny row slice only if padded
    pad_rows = (-rows) % 8
    if pad_rows:
        x = jnp.pad(x, ((0, pad_rows), (0, 0)))
        scales = jnp.pad(scales, ((0, pad_rows), (0, 0)))
    rows_p = rows + pad_rows

    tile_m = _pick_row_tile(rows_p, row_cap)
    tile_n = _pick_lane_tile(ntot, lane_cap)
    grid = (rows_p // tile_m, ntot // tile_n)
    m_inv = grid[0] == 1      # operands indexed only by i never re-DMA
    n_inv = grid[1] == 1      # operands indexed only by j never re-DMA

    in_specs = [
        _spec((tile_m, n_emb), lambda i, j: (i, 0), m_inv, single_buffer),   # scales
        _spec((n_emb, tile_n), lambda i, j: (0, j), n_inv, single_buffer),   # colmask
        _spec((1, tile_n), lambda i, j: (0, j), n_inv, single_buffer),       # bias
        _spec((tile_m, dtot), lambda i, j: (i, 0), m_inv, single_buffer),    # activations
        _spec((dtot, tile_n), lambda i, j: (0, j), n_inv, single_buffer),    # fused weight
    ]

    out = pl.pallas_call(
        _dense_route_kernel,
        out_shape=jax.ShapeDtypeStruct((rows_p, ntot), out_dtype),
        grid=grid,
        in_specs=in_specs,
        out_specs=pl.BlockSpec((tile_m, tile_n), lambda i, j: (i, j)),
        compiler_params=pltpu.CompilerParams(
            dimension_semantics=("parallel", "parallel"),
            vmem_limit_bytes=_VMEM_LIMIT_BYTES),
    )(scales, colmask, bias, x, w)

    return out[:rows] if pad_rows else out


# --------------------------------------------------------------------------
# 'concat' route (1x1 conv, NCHW): VPU per-output-channel FMA over a
# lane-dense (Bt, H*W) slab; tiny weights/bias live in SMEM as scalars.
# --------------------------------------------------------------------------
def _make_concat_kernel(owner):
    # owner[o] = (embedder index, cin_lo, cin_hi) for fused output channel o
    def kernel(scales_ref, w_smem, b_smem, x_ref, o_ref):
        for o, (e, lo, hi) in enumerate(owner):
            acc = b_smem[o]
            for c in range(lo, hi):
                acc = acc + w_smem[o, c] * x_ref[:, c, :].astype(jnp.float32)
            acc = acc * scales_ref[:, e:e + 1]                     # (Bt, HW) * (Bt, 1)
            o_ref[:, o, :] = acc.astype(o_ref.dtype)
    return kernel


def fused_concat_route(x, w_dense, bias, owner, scales, *, out_dtype, single_buffer=True):
    """x: (B, Cin_tot, H*W); w_dense: (Cout_tot, Cin_tot) f32; bias: (Cout_tot,) f32;
    scales: (B, E) f32.  Returns (B, Cout_tot, H*W)."""
    B, cin_tot, hw = x.shape
    cout = len(owner)
    n_emb = scales.shape[1]
    # several samples per grid step (gives the pipeline real work per DMA)
    bt = B if B <= 8 else (8 if B % 8 == 0 else B)
    grid = (B // bt,)
    inv = grid[0] == 1

    in_specs = [
        _spec((bt, n_emb), lambda b: (b, 0), inv, single_buffer),            # scales
        pl.BlockSpec(memory_space=pltpu.MemorySpace.SMEM),                   # conv weights
        pl.BlockSpec(memory_space=pltpu.MemorySpace.SMEM),                   # conv bias
        _spec((bt, cin_tot, hw), lambda b: (b, 0, 0), inv, single_buffer),   # activations
    ]

    return pl.pallas_call(
        _make_concat_kernel(owner),
        out_shape=jax.ShapeDtypeStruct((B, cout, hw), out_dtype),
        grid=grid,
        in_specs=in_specs,
        out_specs=pl.BlockSpec((bt, cout, hw), lambda b: (b, 0, 0)),
        compiler_params=pltpu.CompilerParams(
            dimension_semantics=("parallel",),
            vmem_limit_bytes=_VMEM_LIMIT_BYTES),
    )(scales, w_dense, bias, x)


# --------------------------------------------------------------------------
# Synthetic embedders (AbstractEmbModel analogs) + GeneralConditioner
# --------------------------------------------------------------------------
@dataclasses.dataclass
class EmbedderSpec:
    name: str
    input_key: str
    kind: str                 # 'vector' | 'crossattn' | 'concat'
    w: jnp.ndarray            # (Din, Dout)   (concat: (Cin, Cout) of a 1x1 conv)
    b: jnp.ndarray            # (Dout,)
    ucg_rate: float = 0.0


class GeneralConditioner:
    OUTPUT_DIM2KEYS = {2: "vector", 3: "crossattn", 4: "concat", 5: "concat"}
    KEY2CATDIM = {"vector": 1, "crossattn": 2, "concat": 1}

    def __init__(self, embedders: list[EmbedderSpec]):
        if len(embedders) == 0:
            raise ValueError("no embedders were added! check your config!")
        self.embedders = embedders

        # group embedders by output route, preserving order (== concat order)
        self.routes: dict[str, dict] = {}
        for gi, e in enumerate(embedders):
            if e.kind not in ("vector", "crossattn", "concat"):
                raise ValueError(f"unknown embedder kind: {e.kind}")
            r = self.routes.setdefault(e.kind, {"embedders": [], "indices": []})
            r["embedders"].append(e)
            r["indices"].append(gi)

        # one-time fused parameter construction per route
        for kind, route in self.routes.items():
            if kind in ("vector", "crossattn"):
                route.update(self._build_dense_route(route["embedders"]))
            else:
                route.update(self._build_concat_route(route["embedders"]))

    # -------------------- fused parameter construction --------------------
    @staticmethod
    def _build_dense_route(embs):
        dins = [int(e.w.shape[0]) for e in embs]
        douts = [int(e.w.shape[1]) for e in embs]
        dtot, ntot = sum(dins), sum(douts)
        w = jnp.zeros((dtot, ntot), jnp.float32)          # block-diagonal fused weight
        bias = jnp.zeros((ntot,), jnp.float32)
        colmask = jnp.zeros((len(embs), ntot), jnp.float32)
        ro = co = 0
        for i, e in enumerate(embs):
            di, do = dins[i], douts[i]
            w = w.at[ro:ro + di, co:co + do].set(e.w.astype(jnp.float32))
            bias = bias.at[co:co + do].set(e.b.astype(jnp.float32))
            colmask = colmask.at[i, co:co + do].set(1.0)
            ro += di
            co += do
        return dict(w=w.astype(jnp.bfloat16),             # MXU-native operand dtype
                    bias=bias.reshape(1, ntot),            # bias/mask stay f32 (VPU tail)
                    colmask=colmask, dtot=dtot, ntot=ntot)

    @staticmethod
    def _build_concat_route(embs):
        cins = [int(e.w.shape[0]) for e in embs]
        couts = [int(e.w.shape[1]) for e in embs]
        cin_tot, cout_tot = sum(cins), sum(couts)
        w = jnp.zeros((cout_tot, cin_tot), jnp.float32)    # scalar table for SMEM
        bias = jnp.zeros((cout_tot,), jnp.float32)
        owner = []                                         # per-out-channel static metadata
        ri = ro = 0
        for i, e in enumerate(embs):
            ci, co = cins[i], couts[i]
            w = w.at[ro:ro + co, ri:ri + ci].set(e.w.T.astype(jnp.float32))
            bias = bias.at[ro:ro + co].set(e.b.astype(jnp.float32))
            owner.extend([(i, ri, ri + ci)] * co)
            ri += ci
            ro += co
        # TODO(synk): for large channel counts the unrolled VPU FMA loop should be
        # replaced by an MXU matmul path.
        return dict(w=w, bias=bias, owner=owner, cin_tot=cin_tot, cout=cout_tot)

    # -------------------- per-embedder ucg / force-zero scales --------------------
    def embedder_scales(self, batch, rng_key, force_zero_embeddings):
        scales = []
        for gi, e in enumerate(self.embedders):
            B = batch[e.input_key].shape[0]
            if e.input_key in force_zero_embeddings:
                s = jnp.zeros((B,), jnp.float32)            # == torch.zeros_like(emb)
            elif e.ucg_rate > 0.0 and e.input_key != "caption":
                sub = jax.random.fold_in(rng_key, gi)
                s = jax.random.bernoulli(sub, 1.0 - e.ucg_rate, (B,)).astype(jnp.float32)
            else:
                s = jnp.ones((B,), jnp.float32)
            # TODO(synk): caption ucg (replacing text inputs with ' ') needs a
            # text/tokenizer pipeline and is not representable with tensor inputs.
            scales.append(s)
        return scales

    @staticmethod
    def _cat_cast(xs, axis, dtype):
        xs = [x.astype(dtype) for x in xs]
        return xs[0] if len(xs) == 1 else jnp.concatenate(xs, axis=axis)

    # -------------------- forward --------------------
    def __call__(self, batch, rng_key, force_zero_embeddings: Optional[list] = None):
        if force_zero_embeddings is None:
            force_zero_embeddings = []
        all_scales = self.embedder_scales(batch, rng_key, force_zero_embeddings)

        # TODO(synk): on single-TC v5e/v6e the per-route pallas_calls could be merged
        # into one call (tuple out_shape) to amortize launch overhead for tiny batches.
        output = {}
        for kind, route in self.routes.items():
            embs = route["embedders"]
            xs = [batch[e.input_key] for e in embs]
            bsizes = {int(x.shape[0]) for x in xs}
            if len(bsizes) != 1:
                raise ValueError(f"route '{kind}': embedders must share a batch size, got {bsizes}")
            B = bsizes.pop()
            out_dtype = jnp.result_type(*[x.dtype for x in xs])
            scale_mat = jnp.stack([all_scales[gi] for gi in route["indices"]], axis=1)  # (B, E)

            if kind == "vector":
                x_cat = self._cat_cast(xs, axis=-1, dtype=jnp.bfloat16)         # (B, Dtot)
                out = _run_route(fused_dense_route, x_cat, route["w"], route["bias"],
                                 route["colmask"], scale_mat, out_dtype=out_dtype)
                output["vector"] = out                                          # (B, Ntot)

            elif kind == "crossattn":
                ssizes = {int(x.shape[1]) for x in xs}
                if len(ssizes) != 1:
                    raise ValueError(f"route 'crossattn': embedders must share seq len, got {ssizes}")
                S = ssizes.pop()
                # flatten (B, S) into one real MXU M axis
                x_cat = self._cat_cast(xs, axis=-1, dtype=jnp.bfloat16).reshape(B * S, -1)
                scale_rows = jnp.repeat(scale_mat, S, axis=0)                   # (B*S, E)
                out = _run_route(fused_dense_route, x_cat, route["w"], route["bias"],
                                 route["colmask"], scale_rows, out_dtype=out_dtype)
                output["crossattn"] = out.reshape(B, S, route["ntot"])

            else:  # 'concat' — NCHW kept as-is, 1x1 conv on the VPU
                H, W = int(xs[0].shape[2]), int(xs[0].shape[3])
                x_cat = xs[0] if len(xs) == 1 else jnp.concatenate(xs, axis=1)
                x_cat = x_cat.reshape(B, route["cin_tot"], H * W)
                out = _run_route(fused_concat_route, x_cat, route["w"], route["bias"],
                                 route["owner"], scale_mat, out_dtype=out_dtype)
                output["concat"] = out.reshape(B, route["cout"], H, W)
        return output


# --------------------------------------------------------------------------
# Pure-JAX reference mirroring the PyTorch forward (for correctness checks)
# --------------------------------------------------------------------------
def reference_forward(embedders, batch, scales):
    HI = jax.lax.Precision.HIGHEST
    output = {}
    for e, s in zip(embedders, scales):
        x = batch[e.input_key]
        if e.kind == "vector":
            emb = jnp.dot(x, e.w, precision=HI) + e.b[None, :]
            emb = emb * s[:, None]
        elif e.kind == "crossattn":
            emb = jnp.einsum("bsd,dn->bsn", x, e.w, precision=HI) + e.b[None, None, :]
            emb = emb * s[:, None, None]
        else:  # concat, NCHW 1x1 conv
            emb = jnp.einsum("bchw,cn->bnhw", x, e.w, precision=HI) + e.b[None, :, None, None]
            emb = emb * s[:, None, None, None]
        catdim = GeneralConditioner.KEY2CATDIM[e.kind]
        if e.kind in output:
            output[e.kind] = jnp.concatenate((output[e.kind], emb), axis=catdim)
        else:
            output[e.kind] = emb
    return output


if __name__ == "__main__":
    key = jax.random.PRNGKey(0)
    kp = jax.random.split(key, 16)

    B, S, Din_tok, Din_vec = 2, 8, 32, 32
    Cin, H, W = 4, 16, 16

    emb_vec1 = EmbedderSpec(
        name="VectorEmb1", input_key="vec_cond", kind="vector",
        w=jax.random.normal(kp[0], (Din_vec, 64), jnp.float32) * 0.05,
        b=jax.random.normal(kp[1], (64,), jnp.float32) * 0.01,
        ucg_rate=0.0,
    )
    emb_vec2 = EmbedderSpec(
        name="VectorEmb2", input_key="vec_cond2", kind="vector",
        w=jax.random.normal(kp[2], (Din_vec, 16), jnp.float32) * 0.05,
        b=jax.random.normal(kp[3], (16,), jnp.float32) * 0.01,
        ucg_rate=0.1,   # exercises the Bernoulli ucg branch
    )
    emb_txt = EmbedderSpec(
        name="CrossAttnEmb", input_key="caption_tokens", kind="crossattn",
        w=jax.random.normal(kp[4], (Din_tok, 48), jnp.float32) * 0.05,
        b=jax.random.normal(kp[5], (48,), jnp.float32) * 0.01,
        ucg_rate=0.0,
    )
    emb_img = EmbedderSpec(
        name="ConcatEmb", input_key="image", kind="concat",
        w=jax.random.normal(kp[6], (Cin, 8), jnp.float32) * 0.05,
        b=jax.random.normal(kp[7], (8,), jnp.float32) * 0.01,
        ucg_rate=0.0,
    )

    conditioner = GeneralConditioner([emb_vec1, emb_vec2, emb_txt, emb_img])

    batch = {
        "vec_cond": jax.random.normal(kp[8], (B, Din_vec), jnp.float32),
        "vec_cond2": jax.random.normal(kp[9], (B, Din_vec), jnp.float32),
        "caption_tokens": jax.random.normal(kp[10], (B, S, Din_tok), jnp.float32),
        "image": jax.random.normal(kp[11], (B, Cin, H, W), jnp.float32),  # NCHW
    }

    rng = jax.random.PRNGKey(42)
    force_zero = ["vec_cond"]

    out = conditioner(batch, rng_key=rng, force_zero_embeddings=force_zero)
    out = jax.block_until_ready(out)

    # shape checks (fused routes == concatenated torch outputs)
    assert out["vector"].shape == (B, 64 + 16), out["vector"].shape
    assert out["crossattn"].shape == (B, S, 48), out["crossattn"].shape
    assert out["concat"].shape == (B, 8, H, W), out["concat"].shape
    # force_zero check: first 64 vector channels came from the zeroed embedder
    assert jnp.all(out["vector"][:, :64] == 0.0)

    # numerical check against the pure-JAX f32 reference (same scales).
    # matmul routes use bf16 MXU operands -> loosened tolerance (per review).
    scales = conditioner.embedder_scales(batch, rng, force_zero)
    ref = reference_forward(conditioner.embedders, batch, scales)
    for k, tol in (("vector", 2e-2), ("crossattn", 2e-2), ("concat", 1e-5)):
        assert out[k].shape == ref[k].shape, (k, out[k].shape, ref[k].shape)
        assert jnp.allclose(out[k], ref[k], atol=tol, rtol=tol), k

    print("KERNEL_OK")
</pallas_src>

<mosaic_0001>
module attributes {stable_mosaic.version = 11 : i64} {
  func.func @_dense_route_kernel(%arg0: i32, %arg1: i32, %arg2: memref<8x2xf32, #tpu.memory_space<vmem>>, %arg3: memref<2x80xf32, #tpu.memory_space<vmem>>, %arg4: memref<1x80xf32, #tpu.memory_space<vmem>>, %arg5: memref<8x64xbf16, #tpu.memory_space<vmem>>, %arg6: memref<64x80xbf16, #tpu.memory_space<vmem>>, %arg7: memref<8x80xf32, #tpu.memory_space<vmem>>) attributes {dimension_semantics = [#tpu.dimension_semantics<parallel>, #tpu.dimension_semantics<parallel>], iteration_bounds = array<i64: 1, 1>, scalar_prefetch = 0 : i64, scratch_operands = 0 : i64, tpu.core_type = #tpu.core_type<tc>, window_params = [{pipeline_mode = #tpu.pipeline_mode<synchronous>, transform_indices = @transform_0, window_bounds = array<i64: 8, 2>}, {pipeline_mode = #tpu.pipeline_mode<synchronous>, transform_indices = @transform_1, window_bounds = array<i64: 2, 80>}, {pipeline_mode = #tpu.pipeline_mode<synchronous>, transform_indices = @transform_2, window_bounds = array<i64: 1, 80>}, {pipeline_mode = #tpu.pipeline_mode<synchronous>, transform_indices = @transform_3, window_bounds = array<i64: 8, 64>}, {pipeline_mode = #tpu.pipeline_mode<synchronous>, transform_indices = @transform_4, window_bounds = array<i64: 64, 80>}, {transform_indices = @transform_5, window_bounds = array<i64: 8, 80>}]} {
    %c0 = arith.constant 0 : index
    %c0_0 = arith.constant 0 : index
    %0 = vector.load %arg5[%c0, %c0_0] : memref<8x64xbf16, #tpu.memory_space<vmem>>, vector<8x64xbf16>
    %c0_1 = arith.constant 0 : index
    %c0_2 = arith.constant 0 : index
    %1 = vector.load %arg6[%c0_1, %c0_2] : memref<64x80xbf16, #tpu.memory_space<vmem>>, vector<64x80xbf16>
    %cst = arith.constant dense<0.000000e+00> : vector<8x80xf32>
    %2 = tpu.matmul %0, %1, %cst {dimension_numbers = #tpu.dot_dimension_numbers<[1], [0], [0], [1], [0, 0, 1, 1], [], []>} : vector<8x64xbf16>, vector<64x80xbf16>, vector<8x80xf32> -> vector<8x80xf32>
    %c0_3 = arith.constant 0 : index
    %c0_4 = arith.constant 0 : index
    %3 = vector.load %arg4[%c0_3, %c0_4] : memref<1x80xf32, #tpu.memory_space<vmem>>, vector<1x80xf32>
    %4 = vector.broadcast %3 : vector<1x80xf32> to vector<8x80xf32>
    %5 = arith.addf %2, %4 : vector<8x80xf32>
    %c0_5 = arith.constant 0 : index
    %c0_6 = arith.constant 0 : index
    %6 = vector.load %arg2[%c0_5, %c0_6] : memref<8x2xf32, #tpu.memory_space<vmem>>, vector<8x1xf32>
    %c0_7 = arith.constant 0 : index
    %c0_8 = arith.constant 0 : index
    %7 = vector.load %arg3[%c0_7, %c0_8] : memref<2x80xf32, #tpu.memory_space<vmem>>, vector<1x80xf32>
    %8 = vector.broadcast %6 : vector<8x1xf32> to vector<8x80xf32>
    %9 = vector.broadcast %7 : vector<1x80xf32> to vector<8x80xf32>
    %10 = arith.mulf %8, %9 : vector<8x80xf32>
    %c0_9 = arith.constant 0 : index
    %c1 = arith.constant 1 : index
    %11 = vector.load %arg2[%c0_9, %c1] : memref<8x2xf32, #tpu.memory_space<vmem>>, vector<8x1xf32>
    %c1_10 = arith.constant 1 : index
    %c0_11 = arith.constant 0 : index
    %12 = vector.load %arg3[%c1_10, %c0_11] : memref<2x80xf32, #tpu.memory_space<vmem>>, vector<1x80xf32>
    %13 = vector.broadcast %11 : vector<8x1xf32> to vector<8x80xf32>
    %14 = vector.broadcast %12 : vector<1x80xf32> to vector<8x80xf32>
    %15 = arith.mulf %13, %14 : vector<8x80xf32>
    %16 = arith.addf %10, %15 : vector<8x80xf32>
    %17 = arith.mulf %5, %16 : vector<8x80xf32>
    %c0_12 = arith.constant 0 : index
    %c0_13 = arith.constant 0 : index
    %18 = vector.load %arg7[%c0_12, %c0_13] : memref<8x80xf32, #tpu.memory_space<vmem>>, vector<8x80xf32>
    tpu.vector_store %arg7[%c0_12, %c0_13], %17 {strides = array<i32>} : memref<8x80xf32, #tpu.memory_space<vmem>>, vector<8x80xf32>,
    return
  }
  func.func @transform_0(%arg0: i32, %arg1: i32) -> (i32, i32) {
    %c0_i32 = arith.constant 0 : i32
    %c0_i32_0 = arith.constant 0 : i32
    return %arg0, %c0_i32 : i32, i32
  }
  func.func @transform_1(%arg0: i32, %arg1: i32) -> (i32, i32) {
    %c0_i32 = arith.constant 0 : i32
    %c0_i32_0 = arith.constant 0 : i32
    return %c0_i32, %arg1 : i32, i32
  }
  func.func @transform_2(%arg0: i32, %arg1: i32) -> (i32, i32) {
    %c0_i32 = arith.constant 0 : i32
    %c0_i32_0 = arith.constant 0 : i32
    return %c0_i32, %arg1 : i32, i32
  }
  func.func @transform_3(%arg0: i32, %arg1: i32) -> (i32, i32) {
    %c0_i32 = arith.constant 0 : i32
    %c0_i32_0 = arith.constant 0 : i32
    return %arg0, %c0_i32 : i32, i32
  }
  func.func @transform_4(%arg0: i32, %arg1: i32) -> (i32, i32) {
    %c0_i32 = arith.constant 0 : i32
    %c0_i32_0 = arith.constant 0 : i32
    return %c0_i32, %arg1 : i32, i32
  }
  func.func @transform_5(%arg0: i32, %arg1: i32) -> (i32, i32) {
    %c0_i32 = arith.constant 0 : i32
    return %arg0, %arg1 : i32, i32
  }
}

module attributes {stable_mosaic.version = 11 : i64} {
  func.func @_dense_route_kernel(%arg0: i32, %arg1: i32, %arg2: memref<8x2xf32, #tpu.memory_space<vmem>>, %arg3: memref<2x80xf32, #tpu.memory_space<vmem>>, %arg4: memref<1x80xf32, #tpu.memory_space<vmem>>, %arg5: memref<8x64xbf16, #tpu.memory_space<vmem>>, %arg6: memref<64x80xbf16, #tpu.memory_space<vmem>>, %arg7: memref<8x80xf32, #tpu.memory_space<vmem>>) attributes {dimension_semantics = [#tpu.dimension_semantics<parallel>, #tpu.dimension_semantics<parallel>], iteration_bounds = array<i64: 1, 1>, scalar_prefetch = 0 : i64, scratch_operands = 0 : i64, tpu.core_type = #tpu.core_type<tc>, window_params = [{transform_indices = @transform_0, window_bounds = array<i64: 8, 2>}, {transform_indices = @transform_1, window_bounds = array<i64: 2, 80>}, {transform_indices = @transform_2, window_bounds = array<i64: 1, 80>}, {transform_indices = @transform_3, window_bounds = array<i64: 8, 64>}, {transform_indices = @transform_4, window_bounds = array<i64: 64, 80>}, {transform_indices = @transform_5, window_bounds = array<i64: 8, 80>}]} {
    %c0 = arith.constant 0 : index
    %c0_0 = arith.constant 0 : index
    %0 = vector.load %arg5[%c0, %c0_0] : memref<8x64xbf16, #tpu.memory_space<vmem>>, vector<8x64xbf16>
    %c0_1 = arith.constant 0 : index
    %c0_2 = arith.constant 0 : index
    %1 = vector.load %arg6[%c0_1, %c0_2] : memref<64x80xbf16, #tpu.memory_space<vmem>>, vector<64x80xbf16>
    %cst = arith.constant dense<0.000000e+00> : vector<8x80xf32>
    %2 = tpu.matmul %0, %1, %cst {dimension_numbers = #tpu.dot_dimension_numbers<[1], [0], [0], [1], [0, 0, 1, 1], [], []>} : vector<8x64xbf16>, vector<64x80xbf16>, vector<8x80xf32> -> vector<8x80xf32>
    %c0_3 = arith.constant 0 : index
    %c0_4 = arith.constant 0 : index
    %3 = vector.load %arg4[%c0_3, %c0_4] : memref<1x80xf32, #tpu.memory_space<vmem>>, vector<1x80xf32>
    %4 = vector.broadcast %3 : vector<1x80xf32> to vector<8x80xf32>
    %5 = arith.addf %2, %4 : vector<8x80xf32>
    %c0_5 = arith.constant 0 : index
    %c0_6 = arith.constant 0 : index
    %6 = vector.load %arg2[%c0_5, %c0_6] : memref<8x2xf32, #tpu.memory_space<vmem>>, vector<8x1xf32>
    %c0_7 = arith.constant 0 : index
    %c0_8 = arith.constant 0 : index
    %7 = vector.load %arg3[%c0_7, %c0_8] : memref<2x80xf32, #tpu.memory_space<vmem>>, vector<1x80xf32>
    %8 = vector.broadcast %6 : vector<8x1xf32> to vector<8x80xf32>
    %9 = vector.broadcast %7 : vector<1x80xf32> to vector<8x80xf32>
    %10 = arith.mulf %8, %9 : vector<8x80xf32>
    %c0_9 = arith.constant 0 : index
    %c1 = arith.constant 1 : index
    %11 = vector.load %arg2[%c0_9, %c1] : memref<8x2xf32, #tpu.memory_space<vmem>>, vector<8x1xf32>
    %c1_10 = arith.constant 1 : index
    %c0_11 = arith.constant 0 : index
    %12 = vector.load %arg3[%c1_10, %c0_11] : memref<2x80xf32, #tpu.memory_space<vmem>>, vector<1x80xf32>
    %13 = vector.broadcast %11 : vector<8x1xf32> to vector<8x80xf32>
    %14 = vector.broadcast %12 : vector<1x80xf32> to vector<8x80xf32>
    %15 = arith.mulf %13, %14 : vector<8x80xf32>
    %16 = arith.addf %10, %15 : vector<8x80xf32>
    %17 = arith.mulf %5, %16 : vector<8x80xf32>
    %c0_12 = arith.constant 0 : index
    %c0_13 = arith.constant 0 : index
    %18 = vector.load %arg7[%c0_12, %c0_13] : memref<8x80xf32, #tpu.memory_space<vmem>>, vector<8x80xf32>
    tpu.vector_store %arg7[%c0_12, %c0_13], %17 {strides = array<i32>} : memref<8x80xf32, #tpu.memory_space<vmem>>, vector<8x80xf32>,
    return
  }
  func.func @transform_0(%arg0: i32, %arg1: i32) -> (i32, i32) {
    %c0_i32 = arith.constant 0 : i32
    %c0_i32_0 = arith.constant 0 : i32
    return %arg0, %c0_i32 : i32, i32
  }
  func.func @transform_1(%arg0: i32, %arg1: i32) -> (i32, i32) {
    %c0_i32 = arith.constant 0 : i32
    %c0_i32_0 = arith.constant 0 : i32
    return %c0_i32, %arg1 : i32, i32
  }
  func.func @transform_2(%arg0: i32, %arg1: i32) -> (i32, i32) {
    %c0_i32 = arith.constant 0 : i32
    %c0_i32_0 = arith.constant 0 : i32
    return %c0_i32, %arg1 : i32, i32
  }
  func.func @transform_3(%arg0: i32, %arg1: i32) -> (i32, i32) {
    %c0_i32 = arith.constant 0 : i32
    %c0_i32_0 = arith.constant 0 : i32
    return %arg0, %c0_i32 : i32, i32
  }
  func.func @transform_4(%arg0: i32, %arg1: i32) -> (i32, i32) {
    %c0_i32 = arith.constant 0 : i32
    %c0_i32_0 = arith.constant 0 : i32
    return %c0_i32, %arg1 : i32, i32
  }
  func.func @transform_5(%arg0: i32, %arg1: i32) -> (i32, i32) {
    %c0_i32 = arith.constant 0 : i32
    return %arg0, %arg1 : i32, i32
  }
}

</mosaic_0001>

<llo_original>
// kernel: tpu_custom_call.1
$region0: #{tpu_custom_call.1}
  #allocation0 [shape = 'u32[]', space=smem, size = 0x4, offset = 0x4, fixed_abs, tag = 'smem constant byte address 0x4 - core index']
  #allocation1 [shape = 'u32[144,128]{1,0:T(1,128)}', space=vmem, size = 0x12000, scoped, tag = 'internal scratch']
  %s0 = inlined_call_operand.vmem [shape: f32[8,2], index: 0, kind: input, shape index: {}]
  %s1 = inlined_call_operand.vmem [shape: f32[2,80], index: 1, kind: input, shape index: {}]
  %s2 = inlined_call_operand.vmem [shape: f32[1,80], index: 2, kind: input, shape index: {}]
  %s3 = inlined_call_operand.vmem [shape: bf16[8,64], index: 3, kind: input, shape index: {}]
  %s4 = inlined_call_operand.hbm [shape: bf16[64,80], index: 4, kind: input, shape index: {}]
  %s5 = inlined_call_operand.hbm [shape: f32[8,80], index: 5, kind: output, shape index: {}]
  %s6 = sld [smem:[#allocation0]]
  $region34: #{tpu_custom_call.1} parent=0
    _
  %s8 = ssub.s32 1, %s6
  %s9 = scalar_select 0, %s8, %s6
  $region1: #{tpu_custom_call.1} parent=0
    #allocation2 [shape = 'u8[16384]{0}', space=vmem, size = 0x4000, scoped, tag = 'input window, operand 4, single buffered']
    #allocation3 [shape = 's32[1]{0}', space=sflag, size = 0x4, scoped, tag = 'scoped memory for tpu_custom_call.1']
    #allocation4 [shape = 's32[1]{0}', space=sflag, size = 0x4, scoped, tag = 'scoped memory for tpu_custom_call.1']
    #allocation5 [shape = 'u8[4096]{0}', space=vmem, size = 0x1000, scoped, tag = 'output window, operand 0, single buffered']
    %10 = vsyncpa [#allocation3], 0
    %11 = vsyncpa [#allocation4], 0
    // Predicated region
    $region2: #{tpu_custom_call.1} parent=1 // pred_check
      _
    $region3: #{tpu_custom_call.1} parent=1 // pred_check_branch
      %13 = sbr.rel (0) target = $region5
    $region4: #{tpu_custom_call.1} parent=1 // pred_region
      _
    $region5: #{tpu_custom_call.1} parent=1 // pred_fallthru
      _
    // Predicated region
    $region6: #{tpu_custom_call.1} parent=1 // pred_check
      _
    $region7: #{tpu_custom_call.1} parent=1 // pred_check_branch
      %15 = sbr.rel (0) target = $region9
    $region8: #{tpu_custom_call.1} parent=1 // pred_region
      _
    $region9: #{tpu_custom_call.1} parent=1 // pred_fallthru
      _
    // Predicated region
    $region10: #{tpu_custom_call.1} parent=1 // pred_check
      _
    $region11: #{tpu_custom_call.1} parent=1 // pred_check_branch
      %17 = sbr.rel (0) target = $region13
    $region12: #{tpu_custom_call.1} parent=1 // pred_region
      _
    $region13: #{tpu_custom_call.1} parent=1 // pred_fallthru
      _
    // Predicated region
    $region14: #{tpu_custom_call.1} parent=1 // pred_check
      _
    $region15: #{tpu_custom_call.1} parent=1 // pred_check_branch
      %19 = sbr.rel (0) target = $region17
    $region16: #{tpu_custom_call.1} parent=1 // pred_region
      _
    $region17: #{tpu_custom_call.1} parent=1 // pred_fallthru
      _
    // Predicated region
    $region18: #{tpu_custom_call.1} parent=1 // pred_check
      _
    $region19: #{tpu_custom_call.1} parent=1 // pred_check_branch
      %21 = sbr.rel (0) target = $region21
    $region20: #{tpu_custom_call.1} parent=1 // pred_region
      %s23 = ssub.s32 512, 512
      %24 = vsyncadd [#allocation3], %s23
      %s25 = sshll.u32 [#allocation2], 4
      %s26 = int_to_ptr.vmem [resolvable:$true] %s25
      %31 = dma.hbm_to_vmem [thread:$0]  %s4, 512, %s26, [#allocation3], 64, 64, 4
    $region21: #{tpu_custom_call.1} parent=1 // pred_fallthru
      _
    // Predicated region
    $region22: #{tpu_custom_call.1} parent=1 // pred_check
      _
    $region23: #{tpu_custom_call.1} parent=1 // pred_check_branch
      %33 = sbr.rel (0) target = $region25
    $region24: #{tpu_custom_call.1} parent=1 // pred_region
      %34 = dma.done [#allocation3], 512
    $region25: #{tpu_custom_call.1} parent=1 // pred_fallthru
      _
    %v36 = vld [vmem:[%s3] sm:$0xf]
    %v37 = vld [vmem:[#allocation2] sm:$0xf]
    %v38 = vld [vmem:[#allocation2 + $0x4] sm:$0xf]
    %v39 = vld [vmem:[#allocation2 + $0x8] sm:$0xf]
    %v40 = vld [vmem:[#allocation2 + $0xc] sm:$0xf]
    %v41 = vld [vmem:[#allocation2 + $0x10] sm:$0xf]
    %v42 = vld [vmem:[#allocation2 + $0x14] sm:$0xf]
    %v43 = vld [vmem:[#allocation2 + $0x18] sm:$0xf]
    %v44 = vld [vmem:[#allocation2 + $0x1c] sm:$0xf]
    %v45 = vld [vmem:[%s2] sm:$0x1]
    %v47 = vlaneseq
    %v48 = vshrl.u32 %v47, 7
    %v49 = vsub.s32 0, %v48
    %v50 = vrot.slane %v45, %v49
    %v60 = vunpack.c.l.b16 %v37
    %v61 = vunpack.c.l.b16 %v38
    %v62 = vunpack.c.l.b16 %v39
    %v63 = vunpack.c.l.b16 %v40
    %v64 = vunpack.c.l.b16 %v41
    %v65 = vunpack.c.l.b16 %v42
    %v66 = vunpack.c.l.b16 %v43
    %v67 = vunpack.c.l.b16 %v44
    %v68 = vpack.c.b16 %v61, %v60
    %v69 = vpack.c.b16 %v63, %v62
    %v70 = vpack.c.b16 %v65, %v64
    %v71 = vpack.c.b16 %v67, %v66
    %vm76 = vcmask 523264
    %v78 = vsel %vm76, %v36, 0
    %80 = vmatprep.subr.bf16.mxu0 0
    %81 = vmatpush1.bf16.msra.mxu0 %v68
    %82 = vmatprep.subr.bf16.mxu0 0
    %83 = vmatpush1.bf16.msra.mxu0 %v69
    %84 = vmatprep.subr.bf16.mxu0 0
    %85 = vmatpush1.bf16.msra.mxu0 %v70
    %86 = vmatprep.subr.bf16.mxu0 0
    %87 = vmatpush1.bf16.msra.mxu0 %v71
    %88 = vmatprep.subr.bf16.mxu0 0
    %89 = vmatpush1.bf16.msra.mxu0 0
    %90 = vmatprep.subr.bf16.mxu0 0
    %91 = vmatpush1.bf16.msra.mxu0 0
    %92 = vmatprep.subr.bf16.mxu0 0
    %93 = vmatpush1.bf16.msra.mxu0 0
    %94 = vmatprep.subr.bf16.mxu0 0
    %95 = vmatpush1.bf16.msra.mxu0 0
    %96 = vmatprep.subr.bf16.mxu0 0
    %97 = vmatpush1.bf16.msra.mxu0 0
    %98 = vmatprep.subr.bf16.mxu0 0
    %99 = vmatpush1.bf16.msra.mxu0 0
    %100 = vmatprep.subr.bf16.mxu0 0
    %101 = vmatpush1.bf16.msra.mxu0 0
    %102 = vmatprep.subr.bf16.mxu0 0
    %103 = vmatpush1.bf16.msra.mxu0 0
    %104 = vmatprep.subr.bf16.mxu0 0
    %105 = vmatpush1.bf16.msra.mxu0 0
    %106 = vmatprep.subr.bf16.mxu0 0
    %107 = vmatpush1.bf16.msra.mxu0 0
    %108 = vmatprep.subr.bf16.mxu0 0
    %109 = vmatpush1.bf16.msra.mxu0 0
    %110 = vmatprep.subr.bf16.mxu0 0
    %111 = vmatpush1.bf16.msra.mxu0 0
    %112 = vmatprep.mubr.bf16.mxu0 0
    %113 = vmatmul.mubr.bf16.gmra.mrb[0].mxu0 %v78
    %v114 = vpop.f32.mrb[0].mxu0
    %v115 = vadd.f32 %v50, %v114
    %v116 = vpop.f32.mrb[0].mxu0
    %v117 = vpop.f32.mrb[0].mxu0
    %v118 = vpop.f32.mrb[0].mxu0
    %119 = vdwg.mxu0
    %v120 = vld [vmem:[%s0] sm:$0xff]
    %v121 = vld [vmem:[%s1] sm:$0x1]
    %123 = vset.pattern.permute.xlu0 0
    %124 = vperm.xlu0 %123, %v120
    %v125 = vpop.permute.xlu0 %124
    %v127 = vlaneseq
    %v128 = vshrl.u32 %v127, 7
    %v129 = vsub.s32 0, %v128
    %v130 = vrot.slane %v121, %v129
    %v131 = vmul.f32 %v125, %v130
    %v132 = vld [vmem:[%s1 + $0x1] sm:$0x1]
    %133 = vset.pattern.permute.xlu0 1
    %134 = vperm.xlu0 %133, %v120
    %v135 = vpop.permute.xlu0 %134
    %v137 = vlaneseq
    %v138 = vshrl.u32 %v137, 7
    %v139 = vsub.s32 0, %v138
    %v140 = vrot.slane %v132, %v139
    %v141 = vmul.f32 %v135, %v140
    %v142 = vadd.f32 %v131, %v141
    %v143 = vmul.f32 %v115, %v142
    %vm144 = vcmask 654336
    %145 = vst.msk [vmem:[#allocation5] sm:$0xff] %vm144, %v143
    // Predicated region
    $region26: #{tpu_custom_call.1} parent=1 // pred_check
      _
    $region27: #{tpu_custom_call.1} parent=1 // pred_check_branch
      %147 = sbr.rel (0) target = $region29
    $region28: #{tpu_custom_call.1} parent=1 // pred_region
      %s149 = ssub.s32 128, 128
      %150 = vsyncadd [#allocation4], %s149
      %s152 = sshll.u32 [#allocation5], 4
      %s153 = int_to_ptr.vmem [resolvable:$true] %s152
      %155 = dma.vmem_to_hbm [thread:$0]  %s153, 128, %s5, [#allocation4]
    $region29: #{tpu_custom_call.1} parent=1 // pred_fallthru
      _
    // Predicated region
    $region30: #{tpu_custom_call.1} parent=1 // pred_check
      _
    $region31: #{tpu_custom_call.1} parent=1 // pred_check_branch
      %157 = sbr.rel (0) target = $region33
    $region32: #{tpu_custom_call.1} parent=1 // pred_region
      %158 = dma.done [#allocation4], 128
    $region33: #{tpu_custom_call.1} parent=1 // pred_fallthru
      _
    %159 = vsyncpa [#allocation3], 1
    %160 = vsyncpa [#allocation4], 1

// kernel: tpu_custom_call.1
$region0: #{tpu_custom_call.1}
  #allocation0 [shape = 'u32[]', space=smem, size = 0x4, offset = 0x4, fixed_abs, tag = 'smem constant byte address 0x4 - core index']
  #allocation1 [shape = 'u32[144,128]{1,0:T(1,128)}', space=vmem, size = 0x12000, scoped, tag = 'internal scratch']
  %s0 = inlined_call_operand.vmem [shape: f32[8,2], index: 0, kind: input, shape index: {}]
  %s1 = inlined_call_operand.vmem [shape: f32[2,80], index: 1, kind: input, shape index: {}]
  %s2 = inlined_call_operand.vmem [shape: f32[1,80], index: 2, kind: input, shape index: {}]
  %s3 = inlined_call_operand.vmem [shape: bf16[8,64], index: 3, kind: input, shape index: {}]
  %s4 = inlined_call_operand.hbm [shape: bf16[64,80], index: 4, kind: input, shape index: {}]
  %s5 = inlined_call_operand.hbm [shape: f32[8,80], index: 5, kind: output, shape index: {}]
  %s6 = sld [smem:[#allocation0]]
  $region34: #{tpu_custom_call.1} parent=0
    _
  %s8 = ssub.s32 1, %s6
  %s9 = scalar_select 0, %s8, %s6
  $region1: #{tpu_custom_call.1} parent=0
    #allocation2 [shape = 'u8[16384]{0}', space=vmem, size = 0x4000, scoped, tag = 'input window, operand 4, single buffered']
    #allocation3 [shape = 's32[1]{0}', space=sflag, size = 0x4, scoped, tag = 'scoped memory for tpu_custom_call.1']
    #allocation4 [shape = 's32[1]{0}', space=sflag, size = 0x4, scoped, tag = 'scoped memory for tpu_custom_call.1']
    #allocation5 [shape = 'u8[4096]{0}', space=vmem, size = 0x1000, scoped, tag = 'output window, operand 0, single buffered']
    %10 = vsyncpa [#allocation3], 0
    %11 = vsyncpa [#allocation4], 0
    // Predicated region
    $region2: #{tpu_custom_call.1} parent=1 // pred_check
      _
    $region3: #{tpu_custom_call.1} parent=1 // pred_check_branch
      %13 = sbr.rel (0) target = $region5
    $region4: #{tpu_custom_call.1} parent=1 // pred_region
      _
    $region5: #{tpu_custom_call.1} parent=1 // pred_fallthru
      _
    // Predicated region
    $region6: #{tpu_custom_call.1} parent=1 // pred_check
      _
    $region7: #{tpu_custom_call.1} parent=1 // pred_check_branch
      %15 = sbr.rel (0) target = $region9
    $region8: #{tpu_custom_call.1} parent=1 // pred_region
      _
    $region9: #{tpu_custom_call.1} parent=1 // pred_fallthru
      _
    // Predicated region
    $region10: #{tpu_custom_call.1} parent=1 // pred_check
      _
    $region11: #{tpu_custom_call.1} parent=1 // pred_check_branch
      %17 = sbr.rel (0) target = $region13
    $region12: #{tpu_custom_call.1} parent=1 // pred_region
      _
    $region13: #{tpu_custom_call.1} parent=1 // pred_fallthru
      _
    // Predicated region
    $region14: #{tpu_custom_call.1} parent=1 // pred_check
      _
    $region15: #{tpu_custom_call.1} parent=1 // pred_check_branch
      %19 = sbr.rel (0) target = $region17
    $region16: #{tpu_custom_call.1} parent=1 // pred_region
      _
    $region17: #{tpu_custom_call.1} parent=1 // pred_fallthru
      _
    // Predicated region
    $region18: #{tpu_custom_call.1} parent=1 // pred_check
      _
    $region19: #{tpu_custom_call.1} parent=1 // pred_check_branch
      %21 = sbr.rel (0) target = $region21
    $region20: #{tpu_custom_call.1} parent=1 // pred_region
      %s23 = ssub.s32 512, 512
      %24 = vsyncadd [#allocation3], %s23
      %s25 = sshll.u32 [#allocation2], 4
      %s26 = int_to_ptr.vmem [resolvable:$true] %s25
      %31 = dma.hbm_to_vmem [thread:$0]  %s4, 512, %s26, [#allocation3], 64, 64, 4
    $region21: #{tpu_custom_call.1} parent=1 // pred_fallthru
      _
    // Predicated region
    $region22: #{tpu_custom_call.1} parent=1 // pred_check
      _
    $region23: #{tpu_custom_call.1} parent=1 // pred_check_branch
      %33 = sbr.rel (0) target = $region25
    $region24: #{tpu_custom_call.1} parent=1 // pred_region
      %34 = dma.done [#allocation3], 512
    $region25: #{tpu_custom_call.1} parent=1 // pred_fallthru
      _
    %v36 = vld [vmem:[%s3] sm:$0xf]
    %v37 = vld [vmem:[#allocation2] sm:$0xf]
    %v38 = vld [vmem:[#allocation2 + $0x4] sm:$0xf]
    %v39 = vld [vmem:[#allocation2 + $0x8] sm:$0xf]
    %v40 = vld [vmem:[#allocation2 + $0xc] sm:$0xf]
    %v41 = vld [vmem:[#allocation2 + $0x10] sm:$0xf]
    %v42 = vld [vmem:[#allocation2 + $0x14] sm:$0xf]
    %v43 = vld [vmem:[#allocation2 + $0x18] sm:$0xf]
    %v44 = vld [vmem:[#allocation2 + $0x1c] sm:$0xf]
    %v45 = vld [vmem:[%s2] sm:$0x1]
    %v47 = vlaneseq
    %v48 = vshrl.u32 %v47, 7
    %v49 = vsub.s32 0, %v48
    %v50 = vrot.slane %v45, %v49
    %v60 = vunpack.c.l.b16 %v37
    %v61 = vunpack.c.l.b16 %v38
    %v62 = vunpack.c.l.b16 %v39
    %v63 = vunpack.c.l.b16 %v40
    %v64 = vunpack.c.l.b16 %v41
    %v65 = vunpack.c.l.b16 %v42
    %v66 = vunpack.c.l.b16 %v43
    %v67 = vunpack.c.l.b16 %v44
    %v68 = vpack.c.b16 %v61, %v60
    %v69 = vpack.c.b16 %v63, %v62
    %v70 = vpack.c.b16 %v65, %v64
    %v71 = vpack.c.b16 %v67, %v66
    %vm76 = vcmask 523264
    %v78 = vsel %vm76, %v36, 0
    %80 = vmatprep.subr.bf16.mxu0 0
    %81 = vmatpush1.bf16.msra.mxu0 %v68
    %82 = vmatprep.subr.bf16.mxu0 0
    %83 = vmatpush1.bf16.msra.mxu0 %v69
    %84 = vmatprep.subr.bf16.mxu0 0
    %85 = vmatpush1.bf16.msra.mxu0 %v70
    %86 = vmatprep.subr.bf16.mxu0 0
    %87 = vmatpush1.bf16.msra.mxu0 %v71
    %88 = vmatprep.subr.bf16.mxu0 0
    %89 = vmatpush1.bf16.msra.mxu0 0
    %90 = vmatprep.subr.bf16.mxu0 0
    %91 = vmatpush1.bf16.msra.mxu0 0
    %92 = vmatprep.subr.bf16.mxu0 0
    %93 = vmatpush1.bf16.msra.mxu0 0
    %94 = vmatprep.subr.bf16.mxu0 0
    %95 = vmatpush1.bf16.msra.mxu0 0
    %96 = vmatprep.subr.bf16.mxu0 0
    %97 = vmatpush1.bf16.msra.mxu0 0
    %98 = vmatprep.subr.bf16.mxu0 0
    %99 = vmatpush1.bf16.msra.mxu0 0
    %100 = vmatprep.subr.bf16.mxu0 0
    %101 = vmatpush1.bf16.msra.mxu0 0
    %102 = vmatprep.subr.bf16.mxu0 0
    %103 = vmatpush1.bf16.msra.mxu0 0
    %104 = vmatprep.subr.bf16.mxu0 0
    %105 = vmatpush1.bf16.msra.mxu0 0
    %106 = vmatprep.subr.bf16.mxu0 0
    %107 = vmatpush1.bf16.msra.mxu0 0
    %108 = vmatprep.subr.bf16.mxu0 0
    %109 = vmatpush1.bf16.msra.mxu0 0
    %110 = vmatprep.subr.bf16.mxu0 0
    %111 = vmatpush1.bf16.msra.mxu0 0
    %112 = vmatprep.mubr.bf16.mxu0 0
    %113 = vmatmul.mubr.bf16.gmra.mrb[0].mxu0 %v78
    %v114 = vpop.f32.mrb[0].mxu0
    %v115 = vadd.f32 %v50, %v114
    %v116 = vpop.f32.mrb[0].mxu0
    %v117 = vpop.f32.mrb[0].mxu0
    %v118 = vpop.f32.mrb[0].mxu0
    %119 = vdwg.mxu0
    %v120 = vld [vmem:[%s0] sm:$0xff]
    %v121 = vld [vmem:[%s1] sm:$0x1]
    %123 = vset.pattern.permute.xlu0 0
    %124 = vperm.xlu0 %123, %v120
    %v125 = vpop.permute.xlu0 %124
    %v127 = vlaneseq
    %v128 = vshrl.u32 %v127, 7
    %v129 = vsub.s32 0, %v128
    %v130 = vrot.slane %v121, %v129
    %v131 = vmul.f32 %v125, %v130
    %v132 = vld [vmem:[%s1 + $0x1] sm:$0x1]
    %133 = vset.pattern.permute.xlu0 1
    %134 = vperm.xlu0 %133, %v120
    %v135 = vpop.permute.xlu0 %134
    %v137 = vlaneseq
    %v138 = vshrl.u32 %v137, 7
    %v139 = vsub.s32 0, %v138
    %v140 = vrot.slane %v132, %v139
    %v141 = vmul.f32 %v135, %v140
    %v142 = vadd.f32 %v131, %v141
    %v143 = vmul.f32 %v115, %v142
    %vm144 = vcmask 654336
    %145 = vst.msk [vmem:[#allocation5] sm:$0xff] %vm144, %v143
    // Predicated region
    $region26: #{tpu_custom_call.1} parent=1 // pred_check
      _
    $region27: #{tpu_custom_call.1} parent=1 // pred_check_branch
      %147 = sbr.rel (0) target = $region29
    $region28: #{tpu_custom_call.1} parent=1 // pred_region
      %s149 = ssub.s32 128, 128
      %150 = vsyncadd [#allocation4], %s149
      %s152 = sshll.u32 [#allocation5], 4
      %s153 = int_to_ptr.vmem [resolvable:$true] %s152
      %155 = dma.vmem_to_hbm [thread:$0]  %s153, 128, %s5, [#allocation4]
    $region29: #{tpu_custom_call.1} parent=1 // pred_fallthru
      _
    // Predicated region
    $region30: #{tpu_custom_call.1} parent=1 // pred_check
      _
    $region31: #{tpu_custom_call.1} parent=1 // pred_check_branch
      %157 = sbr.rel (0) target = $region33
    $region32: #{tpu_custom_call.1} parent=1 // pred_region
      %158 = dma.done [#allocation4], 128
    $region33: #{tpu_custom_call.1} parent=1 // pred_fallthru
      _
    %159 = vsyncpa [#allocation3], 1
    %160 = vsyncpa [#allocation4], 1

</llo_original>
